<compile_context>
chip_gen: v7x
topology: tpu7x:2x2x1
jax: 0.10.0
libtpu: 0.0.40
codegen_flags: <defaults>
</compile_context>

<pallas_src>
import jax
import jax.numpy as jnp
from jax.experimental import pallas as pl
from jax.experimental.pallas import tpu as pltpu

_H_PAD = 256    # 220 hidden features padded to lane-dense 256
_OUT_PAD = 128  # scalar critic output padded to a lane-dense 128-wide block


def discriminator_kernel(x_ref,
                         w1_ref, b1_ref,
                         w2_ref, b2_ref,
                         w3_ref, b3_ref,
                         wl1_ref, bl1_ref,
                         wl2_ref, bl2_ref,
                         wl3_ref, bl3_ref,
                         out_ref):
    """conv(center-tap)->leaky x3 -> linear->leaky -> linear->relu -> linear."""

    def leaky(v):  # nn.LeakyReLU(0.01), computed in f32
        return jnp.where(v >= 0.0, v, 0.01 * v)

    # conv1 (4 -> 32): K=4 barely uses the MXU but is <1% of FLOPs; accept it.
    x = x_ref[...].astype(jnp.bfloat16)                               # (TB, 4)
    h = jnp.dot(x, w1_ref[...], preferred_element_type=jnp.float32) + b1_ref[...]
    h = leaky(h)
    # conv2 (32 -> 64)
    h = jnp.dot(h.astype(jnp.bfloat16), w2_ref[...],
                preferred_element_type=jnp.float32) + b2_ref[...]
    h = leaky(h)
    # conv3 (64 -> 128)
    h = jnp.dot(h.astype(jnp.bfloat16), w3_ref[...],
                preferred_element_type=jnp.float32) + b3_ref[...]
    h = leaky(h)
    # flatten (L == 1, already (TB, 128)); linear1 (128 -> 220, padded 256)
    h = jnp.dot(h.astype(jnp.bfloat16), wl1_ref[...],
                preferred_element_type=jnp.float32) + bl1_ref[...]
    h = leaky(h)
    # linear2 (220 -> 220, padded 256x256) + relu
    h = jnp.dot(h.astype(jnp.bfloat16), wl2_ref[...],
                preferred_element_type=jnp.float32) + bl2_ref[...]
    h = jnp.maximum(h, 0.0)
    # linear3 (220 -> 1, padded 256x128): lane-dense output block, column 0
    # holds the real critic score; the other 127 columns are exact zeros.
    out_ref[...] = (jnp.dot(h.astype(jnp.bfloat16), wl3_ref[...],
                            preferred_element_type=jnp.float32) + bl3_ref[...])


def init_params(key):
    """Deterministic PyTorch-default-style (uniform +-1/sqrt(fan_in)) init."""
    keys = jax.random.split(key, 12)

    def u(k, shape, fan_in):
        bound = 1.0 / float(fan_in) ** 0.5
        return jax.random.uniform(k, shape, jnp.float32, -bound, bound)

    p = {}
    # Conv1d weights: (out_ch, in_ch, kernel=5)
    p["conv1_w"] = u(keys[0], (32, 4, 5), 4 * 5)
    p["conv1_b"] = u(keys[1], (32,), 4 * 5)
    p["conv2_w"] = u(keys[2], (64, 32, 5), 32 * 5)
    p["conv2_b"] = u(keys[3], (64,), 32 * 5)
    p["conv3_w"] = u(keys[4], (128, 64, 5), 64 * 5)
    p["conv3_b"] = u(keys[5], (128,), 64 * 5)
    # Linear weights: (out_features, in_features)
    p["lin1_w"] = u(keys[6], (220, 128), 128)
    p["lin1_b"] = u(keys[7], (220,), 128)
    p["lin2_w"] = u(keys[8], (220, 220), 220)
    p["lin2_b"] = u(keys[9], (220,), 220)
    p["lin3_w"] = u(keys[10], (1, 220), 220)
    p["lin3_b"] = u(keys[11], (1,), 220)
    return p


def _pad2(a, rows, cols):
    r, c = a.shape
    return jnp.pad(a, ((0, rows - r), (0, cols - c)))


def _round_up(a, m):
    return (a + m - 1) // m * m


def discriminator_forward(x, p, *, tile_b=1024):
    """x: (B, 4, 1) float32 in NCL layout -> (B, 1) float32."""
    B, C, L = x.shape
    assert C == 4, "Discriminator expects 4 input channels"
    assert L == 1, "reshape(B, C) in the reference forward requires length == 1"

    x2 = x[:, :, 0].astype(jnp.float32)                   # (B, 4)

    # Effective (exact for L==1) conv weights: right-multiply orientation, bf16.
    w1 = p["conv1_w"][:, :, 2].T.astype(jnp.bfloat16)     # (4, 32)
    w2 = p["conv2_w"][:, :, 2].T.astype(jnp.bfloat16)     # (32, 64)
    w3 = p["conv3_w"][:, :, 2].T.astype(jnp.bfloat16)     # (64, 128)

    # Linear weights padded to lane-dense widths (zeros are exact no-ops).
    wl1 = _pad2(p["lin1_w"].T, 128, _H_PAD).astype(jnp.bfloat16)     # (128, 256)
    wl2 = _pad2(p["lin2_w"].T, _H_PAD, _H_PAD).astype(jnp.bfloat16)  # (256, 256)
    wl3 = _pad2(p["lin3_w"].T, _H_PAD, _OUT_PAD).astype(jnp.bfloat16)  # (256, 128)

    # Biases stay f32 for exact bias-add / activation arithmetic.
    b1 = p["conv1_b"][None, :]
    b2 = p["conv2_b"][None, :]
    b3 = p["conv3_b"][None, :]
    bl1 = _pad2(p["lin1_b"][None, :], 1, _H_PAD)
    bl2 = _pad2(p["lin2_b"][None, :], 1, _H_PAD)
    bl3 = _pad2(p["lin3_b"][None, :], 1, _OUT_PAD)

    # Batch tiling: zero-pad B up to a multiple of TILE_B (zero rows are
    # harmless through this network; they are sliced away below).
    tile_b = _round_up(int(tile_b), 8)
    TILE_B = min(tile_b, _round_up(B, 8))
    B_pad = _round_up(B, TILE_B)
    if B_pad != B:
        x2 = jnp.pad(x2, ((0, B_pad - B), (0, 0)))
    grid = (B_pad // TILE_B,)

    def resident(shape):
        # Whole-array block + constant index_map -> stays VMEM-resident.
        return pl.BlockSpec(shape, lambda i: (0, 0))

    in_specs = [
        pl.BlockSpec((TILE_B, 4), lambda i: (i, 0)),       # x: tiled over batch
        resident(w1.shape), resident(b1.shape),
        resident(w2.shape), resident(b2.shape),
        resident(w3.shape), resident(b3.shape),
        resident(wl1.shape), resident(bl1.shape),
        resident(wl2.shape), resident(bl2.shape),
        resident(wl3.shape), resident(bl3.shape),
    ]
    out_spec = pl.BlockSpec((TILE_B, _OUT_PAD), lambda i: (i, 0))

    flops = 2 * B_pad * (4 * 32 + 32 * 64 + 64 * 128
                         + 128 * _H_PAD + _H_PAD * _H_PAD + _H_PAD * _OUT_PAD)
    weight_bytes = sum(int(a.size) * a.dtype.itemsize
                       for a in (w1, w2, w3, wl1, wl2, wl3,
                                 b1, b2, b3, bl1, bl2, bl3))
    bytes_accessed = int(x2.size) * 4 + B_pad * _OUT_PAD * 4 + weight_bytes

    out_full = pl.pallas_call(
        discriminator_kernel,
        out_shape=jax.ShapeDtypeStruct((B_pad, _OUT_PAD), jnp.float32),
        grid=grid,
        in_specs=in_specs,
        out_specs=out_spec,
        compiler_params=pltpu.CompilerParams(
            dimension_semantics=("parallel",),        # v7x dual-TC batch shard
            vmem_limit_bytes=32 * 1024 * 1024,        # safe on v5e/v6e/v7x
        ),
        cost_estimate=pl.CostEstimate(
            flops=flops, transcendentals=0, bytes_accessed=bytes_accessed),
    )(x2, w1, b1, w2, b2, w3, b3, wl1, bl1, wl2, bl2, wl3, bl3)

    return out_full[:B, :1]                               # (B, 1)


if __name__ == "__main__":
    key = jax.random.PRNGKey(0)
    k_x, k_params = jax.random.split(key)

    B = 2
    x = jax.random.normal(k_x, (B, 4, 1), dtype=jnp.float32)   # NCL, L=1
    params = init_params(k_params)

    out = discriminator_forward(x, params)
    out = jax.block_until_ready(out)

    assert out.shape == (B, 1)
    assert out.dtype == jnp.float32
    print("KERNEL_OK")
</pallas_src>

<mosaic_0001>
module attributes {stable_mosaic.version = 11 : i64} {
  func.func @discriminator_kernel(%arg0: i32, %arg1: memref<8x4xf32, #tpu.memory_space<vmem>>, %arg2: memref<4x32xbf16, #tpu.memory_space<vmem>>, %arg3: memref<1x32xf32, #tpu.memory_space<vmem>>, %arg4: memref<32x64xbf16, #tpu.memory_space<vmem>>, %arg5: memref<1x64xf32, #tpu.memory_space<vmem>>, %arg6: memref<64x128xbf16, #tpu.memory_space<vmem>>, %arg7: memref<1x128xf32, #tpu.memory_space<vmem>>, %arg8: memref<128x256xbf16, #tpu.memory_space<vmem>>, %arg9: memref<1x256xf32, #tpu.memory_space<vmem>>, %arg10: memref<256x256xbf16, #tpu.memory_space<vmem>>, %arg11: memref<1x256xf32, #tpu.memory_space<vmem>>, %arg12: memref<256x128xbf16, #tpu.memory_space<vmem>>, %arg13: memref<1x128xf32, #tpu.memory_space<vmem>>, %arg14: memref<8x128xf32, #tpu.memory_space<vmem>>) attributes {dimension_semantics = [#tpu.dimension_semantics<parallel>], iteration_bounds = array<i64: 1>, scalar_prefetch = 0 : i64, scratch_operands = 0 : i64, tpu.core_type = #tpu.core_type<tc>, window_params = [{transform_indices = @transform_0, window_bounds = array<i64: 8, 4>}, {pipeline_mode = #tpu.pipeline_mode<synchronous>, transform_indices = @transform_1, window_bounds = array<i64: 4, 32>}, {pipeline_mode = #tpu.pipeline_mode<synchronous>, transform_indices = @transform_2, window_bounds = array<i64: 1, 32>}, {pipeline_mode = #tpu.pipeline_mode<synchronous>, transform_indices = @transform_3, window_bounds = array<i64: 32, 64>}, {pipeline_mode = #tpu.pipeline_mode<synchronous>, transform_indices = @transform_4, window_bounds = array<i64: 1, 64>}, {pipeline_mode = #tpu.pipeline_mode<synchronous>, transform_indices = @transform_5, window_bounds = array<i64: 64, 128>}, {pipeline_mode = #tpu.pipeline_mode<synchronous>, transform_indices = @transform_6, window_bounds = array<i64: 1, 128>}, {pipeline_mode = #tpu.pipeline_mode<synchronous>, transform_indices = @transform_7, window_bounds = array<i64: 128, 256>}, {pipeline_mode = #tpu.pipeline_mode<synchronous>, transform_indices = @transform_8, window_bounds = array<i64: 1, 256>}, {pipeline_mode = #tpu.pipeline_mode<synchronous>, transform_indices = @transform_9, window_bounds = array<i64: 256, 256>}, {pipeline_mode = #tpu.pipeline_mode<synchronous>, transform_indices = @transform_10, window_bounds = array<i64: 1, 256>}, {pipeline_mode = #tpu.pipeline_mode<synchronous>, transform_indices = @transform_11, window_bounds = array<i64: 256, 128>}, {pipeline_mode = #tpu.pipeline_mode<synchronous>, transform_indices = @transform_12, window_bounds = array<i64: 1, 128>}, {transform_indices = @transform_13, window_bounds = array<i64: 8, 128>}]} {
    %c0 = arith.constant 0 : index
    %c0_0 = arith.constant 0 : index
    %0 = vector.load %arg1[%c0, %c0_0] : memref<8x4xf32, #tpu.memory_space<vmem>>, vector<8x4xf32>
    %1 = arith.truncf %0 : vector<8x4xf32> to vector<8x4xbf16>
    %c0_1 = arith.constant 0 : index
    %c0_2 = arith.constant 0 : index
    %2 = vector.load %arg2[%c0_1, %c0_2] : memref<4x32xbf16, #tpu.memory_space<vmem>>, vector<4x32xbf16>
    %cst = arith.constant dense<0.000000e+00> : vector<8x32xf32>
    %3 = tpu.matmul %1, %2, %cst {dimension_numbers = #tpu.dot_dimension_numbers<[1], [0], [0], [1], [0, 0, 1, 1], [], []>} : vector<8x4xbf16>, vector<4x32xbf16>, vector<8x32xf32> -> vector<8x32xf32>
    %c0_3 = arith.constant 0 : index
    %c0_4 = arith.constant 0 : index
    %4 = vector.load %arg3[%c0_3, %c0_4] : memref<1x32xf32, #tpu.memory_space<vmem>>, vector<1x32xf32>
    %5 = vector.broadcast %4 : vector<1x32xf32> to vector<8x32xf32>
    %6 = arith.addf %3, %5 : vector<8x32xf32>
    %cst_5 = arith.constant 0.000000e+00 : f32
    %7 = vector.broadcast %cst_5 : f32 to vector<8x32xf32>
    %8 = arith.cmpf oge, %6, %7 : vector<8x32xf32>
    %cst_6 = arith.constant 0.00999999977 : f32
    %9 = vector.broadcast %cst_6 : f32 to vector<8x32xf32>
    %10 = arith.mulf %9, %6 : vector<8x32xf32>
    %11 = arith.select %8, %6, %10 : vector<8x32xi1>, vector<8x32xf32>
    %12 = arith.truncf %11 : vector<8x32xf32> to vector<8x32xbf16>
    %c0_7 = arith.constant 0 : index
    %c0_8 = arith.constant 0 : index
    %13 = vector.load %arg4[%c0_7, %c0_8] : memref<32x64xbf16, #tpu.memory_space<vmem>>, vector<32x64xbf16>
    %cst_9 = arith.constant dense<0.000000e+00> : vector<8x64xf32>
    %14 = tpu.matmul %12, %13, %cst_9 {dimension_numbers = #tpu.dot_dimension_numbers<[1], [0], [0], [1], [0, 0, 1, 1], [], []>} : vector<8x32xbf16>, vector<32x64xbf16>, vector<8x64xf32> -> vector<8x64xf32>
    %c0_10 = arith.constant 0 : index
    %c0_11 = arith.constant 0 : index
    %15 = vector.load %arg5[%c0_10, %c0_11] : memref<1x64xf32, #tpu.memory_space<vmem>>, vector<1x64xf32>
    %16 = vector.broadcast %15 : vector<1x64xf32> to vector<8x64xf32>
    %17 = arith.addf %14, %16 : vector<8x64xf32>
    %cst_12 = arith.constant 0.000000e+00 : f32
    %18 = vector.broadcast %cst_12 : f32 to vector<8x64xf32>
    %19 = arith.cmpf oge, %17, %18 : vector<8x64xf32>
    %cst_13 = arith.constant 0.00999999977 : f32
    %20 = vector.broadcast %cst_13 : f32 to vector<8x64xf32>
    %21 = arith.mulf %20, %17 : vector<8x64xf32>
    %22 = arith.select %19, %17, %21 : vector<8x64xi1>, vector<8x64xf32>
    %23 = arith.truncf %22 : vector<8x64xf32> to vector<8x64xbf16>
    %c0_14 = arith.constant 0 : index
    %c0_15 = arith.constant 0 : index
    %24 = vector.load %arg6[%c0_14, %c0_15] : memref<64x128xbf16, #tpu.memory_space<vmem>>, vector<64x128xbf16>
    %cst_16 = arith.constant dense<0.000000e+00> : vector<8x128xf32>
    %25 = tpu.matmul %23, %24, %cst_16 {dimension_numbers = #tpu.dot_dimension_numbers<[1], [0], [0], [1], [0, 0, 1, 1], [], []>} : vector<8x64xbf16>, vector<64x128xbf16>, vector<8x128xf32> -> vector<8x128xf32>
    %c0_17 = arith.constant 0 : index
    %c0_18 = arith.constant 0 : index
    %26 = vector.load %arg7[%c0_17, %c0_18] : memref<1x128xf32, #tpu.memory_space<vmem>>, vector<1x128xf32>
    %27 = vector.broadcast %26 : vector<1x128xf32> to vector<8x128xf32>
    %28 = arith.addf %25, %27 : vector<8x128xf32>
    %cst_19 = arith.constant 0.000000e+00 : f32
    %29 = vector.broadcast %cst_19 : f32 to vector<8x128xf32>
    %30 = arith.cmpf oge, %28, %29 : vector<8x128xf32>
    %cst_20 = arith.constant 0.00999999977 : f32
    %31 = vector.broadcast %cst_20 : f32 to vector<8x128xf32>
    %32 = arith.mulf %31, %28 : vector<8x128xf32>
    %33 = arith.select %30, %28, %32 : vector<8x128xi1>, vector<8x128xf32>
    %34 = arith.truncf %33 : vector<8x128xf32> to vector<8x128xbf16>
    %c0_21 = arith.constant 0 : index
    %c0_22 = arith.constant 0 : index
    %35 = vector.load %arg8[%c0_21, %c0_22] : memref<128x256xbf16, #tpu.memory_space<vmem>>, vector<128x256xbf16>
    %cst_23 = arith.constant dense<0.000000e+00> : vector<8x256xf32>
    %36 = tpu.matmul %34, %35, %cst_23 {dimension_numbers = #tpu.dot_dimension_numbers<[1], [0], [0], [1], [0, 0, 1, 1], [], []>} : vector<8x128xbf16>, vector<128x256xbf16>, vector<8x256xf32> -> vector<8x256xf32>
    %c0_24 = arith.constant 0 : index
    %c0_25 = arith.constant 0 : index
    %37 = vector.load %arg9[%c0_24, %c0_25] : memref<1x256xf32, #tpu.memory_space<vmem>>, vector<1x256xf32>
    %38 = vector.broadcast %37 : vector<1x256xf32> to vector<8x256xf32>
    %39 = arith.addf %36, %38 : vector<8x256xf32>
    %cst_26 = arith.constant 0.000000e+00 : f32
    %40 = vector.broadcast %cst_26 : f32 to vector<8x256xf32>
    %41 = arith.cmpf oge, %39, %40 : vector<8x256xf32>
    %cst_27 = arith.constant 0.00999999977 : f32
    %42 = vector.broadcast %cst_27 : f32 to vector<8x256xf32>
    %43 = arith.mulf %42, %39 : vector<8x256xf32>
    %44 = arith.select %41, %39, %43 : vector<8x256xi1>, vector<8x256xf32>
    %45 = arith.truncf %44 : vector<8x256xf32> to vector<8x256xbf16>
    %c0_28 = arith.constant 0 : index
    %c0_29 = arith.constant 0 : index
    %46 = vector.load %arg10[%c0_28, %c0_29] : memref<256x256xbf16, #tpu.memory_space<vmem>>, vector<256x256xbf16>
    %cst_30 = arith.constant dense<0.000000e+00> : vector<8x256xf32>
    %47 = tpu.matmul %45, %46, %cst_30 {dimension_numbers = #tpu.dot_dimension_numbers<[1], [0], [0], [1], [0, 0, 1, 1], [], []>} : vector<8x256xbf16>, vector<256x256xbf16>, vector<8x256xf32> -> vector<8x256xf32>
    %c0_31 = arith.constant 0 : index
    %c0_32 = arith.constant 0 : index
    %48 = vector.load %arg11[%c0_31, %c0_32] : memref<1x256xf32, #tpu.memory_space<vmem>>, vector<1x256xf32>
    %49 = vector.broadcast %48 : vector<1x256xf32> to vector<8x256xf32>
    %50 = arith.addf %47, %49 : vector<8x256xf32>
    %cst_33 = arith.constant 0.000000e+00 : f32
    %51 = vector.broadcast %cst_33 : f32 to vector<8x256xf32>
    %52 = arith.maximumf %50, %51 : vector<8x256xf32>
    %53 = arith.truncf %52 : vector<8x256xf32> to vector<8x256xbf16>
    %c0_34 = arith.constant 0 : index
    %c0_35 = arith.constant 0 : index
    %54 = vector.load %arg12[%c0_34, %c0_35] : memref<256x128xbf16, #tpu.memory_space<vmem>>, vector<256x128xbf16>
    %cst_36 = arith.constant dense<0.000000e+00> : vector<8x128xf32>
    %55 = tpu.matmul %53, %54, %cst_36 {dimension_numbers = #tpu.dot_dimension_numbers<[1], [0], [0], [1], [0, 0, 1, 1], [], []>} : vector<8x256xbf16>, vector<256x128xbf16>, vector<8x128xf32> -> vector<8x128xf32>
    %c0_37 = arith.constant 0 : index
    %c0_38 = arith.constant 0 : index
    %56 = vector.load %arg13[%c0_37, %c0_38] : memref<1x128xf32, #tpu.memory_space<vmem>>, vector<1x128xf32>
    %57 = vector.broadcast %56 : vector<1x128xf32> to vector<8x128xf32>
    %58 = arith.addf %55, %57 : vector<8x128xf32>
    %c0_39 = arith.constant 0 : index
    %c0_40 = arith.constant 0 : index
    %59 = vector.load %arg14[%c0_39, %c0_40] : memref<8x128xf32, #tpu.memory_space<vmem>>, vector<8x128xf32>
    tpu.vector_store %arg14[%c0_39, %c0_40], %58 {strides = array<i32>} : memref<8x128xf32, #tpu.memory_space<vmem>>, vector<8x128xf32>,
    return
  }
  func.func @transform_0(%arg0: i32) -> (i32, i32) {
    %c0_i32 = arith.constant 0 : i32
    %c0_i32_0 = arith.constant 0 : i32
    return %arg0, %c0_i32 : i32, i32
  }
  func.func @transform_1(%arg0: i32) -> (i32, i32) {
    %c0_i32 = arith.constant 0 : i32
    %c0_i32_0 = arith.constant 0 : i32
    %c0_i32_1 = arith.constant 0 : i32
    return %c0_i32, %c0_i32_0 : i32, i32
  }
  func.func @transform_2(%arg0: i32) -> (i32, i32) {
    %c0_i32 = arith.constant 0 : i32
    %c0_i32_0 = arith.constant 0 : i32
    %c0_i32_1 = arith.constant 0 : i32
    return %c0_i32, %c0_i32_0 : i32, i32
  }
  func.func @transform_3(%arg0: i32) -> (i32, i32) {
    %c0_i32 = arith.constant 0 : i32
    %c0_i32_0 = arith.constant 0 : i32
    %c0_i32_1 = arith.constant 0 : i32
    return %c0_i32, %c0_i32_0 : i32, i32
  }
  func.func @transform_4(%arg0: i32) -> (i32, i32) {
    %c0_i32 = arith.constant 0 : i32
    %c0_i32_0 = arith.constant 0 : i32
    %c0_i32_1 = arith.constant 0 : i32
    return %c0_i32, %c0_i32_0 : i32, i32
  }
  func.func @transform_5(%arg0: i32) -> (i32, i32) {
    %c0_i32 = arith.constant 0 : i32
    %c0_i32_0 = arith.constant 0 : i32
    %c0_i32_1 = arith.constant 0 : i32
    return %c0_i32, %c0_i32_0 : i32, i32
  }
  func.func @transform_6(%arg0: i32) -> (i32, i32) {
    %c0_i32 = arith.constant 0 : i32
    %c0_i32_0 = arith.constant 0 : i32
    %c0_i32_1 = arith.constant 0 : i32
    return %c0_i32, %c0_i32_0 : i32, i32
  }
  func.func @transform_7(%arg0: i32) -> (i32, i32) {
    %c0_i32 = arith.constant 0 : i32
    %c0_i32_0 = arith.constant 0 : i32
    %c0_i32_1 = arith.constant 0 : i32
    return %c0_i32, %c0_i32_0 : i32, i32
  }
  func.func @transform_8(%arg0: i32) -> (i32, i32) {
    %c0_i32 = arith.constant 0 : i32
    %c0_i32_0 = arith.constant 0 : i32
    %c0_i32_1 = arith.constant 0 : i32
    return %c0_i32, %c0_i32_0 : i32, i32
  }
  func.func @transform_9(%arg0: i32) -> (i32, i32) {
    %c0_i32 = arith.constant 0 : i32
    %c0_i32_0 = arith.constant 0 : i32
    %c0_i32_1 = arith.constant 0 : i32
    return %c0_i32, %c0_i32_0 : i32, i32
  }
  func.func @transform_10(%arg0: i32) -> (i32, i32) {
    %c0_i32 = arith.constant 0 : i32
    %c0_i32_0 = arith.constant 0 : i32
    %c0_i32_1 = arith.constant 0 : i32
    return %c0_i32, %c0_i32_0 : i32, i32
  }
  func.func @transform_11(%arg0: i32) -> (i32, i32) {
    %c0_i32 = arith.constant 0 : i32
    %c0_i32_0 = arith.constant 0 : i32
    %c0_i32_1 = arith.constant 0 : i32
    return %c0_i32, %c0_i32_0 : i32, i32
  }
  func.func @transform_12(%arg0: i32) -> (i32, i32) {
    %c0_i32 = arith.constant 0 : i32
    %c0_i32_0 = arith.constant 0 : i32
    %c0_i32_1 = arith.constant 0 : i32
    return %c0_i32, %c0_i32_0 : i32, i32
  }
  func.func @transform_13(%arg0: i32) -> (i32, i32) {
    %c0_i32 = arith.constant 0 : i32
    %c0_i32_0 = arith.constant 0 : i32
    return %arg0, %c0_i32 : i32, i32
  }
}

</mosaic_0001>

<llo_original>
// kernel: tpu_custom_call.1
$region0: #{tpu_custom_call.1}
  #allocation0 [shape = 'u32[]', space=smem, size = 0x4, offset = 0x4, fixed_abs, tag = 'smem constant byte address 0x4 - core index']
  #allocation1 [shape = 'u32[144,128]{1,0:T(1,128)}', space=vmem, size = 0x12000, scoped, tag = 'internal scratch']
  %s0 = inlined_call_operand.vmem [shape: f32[8,4], index: 0, kind: input, shape index: {}]
  %s1 = inlined_call_operand.vmem [shape: bf16[4,32], index: 1, kind: input, shape index: {}]
  %s2 = inlined_call_operand.vmem [shape: f32[1,32], index: 2, kind: input, shape index: {}]
  %s3 = inlined_call_operand.vmem [shape: bf16[32,64], index: 3, kind: input, shape index: {}]
  %s4 = inlined_call_operand.vmem [shape: f32[1,64], index: 4, kind: input, shape index: {}]
  %s5 = inlined_call_operand.hbm [shape: bf16[64,128], index: 5, kind: input, shape index: {}]
  %s6 = inlined_call_operand.vmem [shape: f32[1,128], index: 6, kind: input, shape index: {}]
  %s7 = inlined_call_operand.hbm [shape: bf16[128,256], index: 7, kind: input, shape index: {}]
  %s8 = inlined_call_operand.vmem [shape: f32[1,256], index: 8, kind: input, shape index: {}]
  %s9 = inlined_call_operand.hbm [shape: bf16[256,256], index: 9, kind: input, shape index: {}]
  %s10 = inlined_call_operand.vmem [shape: f32[1,256], index: 10, kind: input, shape index: {}]
  %s11 = inlined_call_operand.hbm [shape: bf16[256,128], index: 11, kind: input, shape index: {}]
  %s12 = inlined_call_operand.vmem [shape: f32[1,128], index: 12, kind: input, shape index: {}]
  %s13 = inlined_call_operand.hbm [shape: f32[8,128], index: 13, kind: output, shape index: {}]
  %s14 = sld [smem:[#allocation0]]
  $region78: #{tpu_custom_call.1} parent=0
    _
  %s16 = ssub.s32 1, %s14
  %s17 = scalar_select 0, %s16, %s14
  $region1: #{tpu_custom_call.1} parent=0
    #allocation2 [shape = 'u8[16384]{0}', space=vmem, size = 0x4000, scoped, tag = 'input window, operand 5, single buffered']
    #allocation3 [shape = 's32[1]{0}', space=sflag, size = 0x4, scoped, tag = 'scoped memory for tpu_custom_call.1']
    #allocation4 [shape = 's32[1]{0}', space=sflag, size = 0x4, scoped, tag = 'scoped memory for tpu_custom_call.1']
    #allocation5 [shape = 'u8[65536]{0}', space=vmem, size = 0x10000, scoped, tag = 'input window, operand 7, single buffered']
    #allocation6 [shape = 's32[1]{0}', space=sflag, size = 0x4, scoped, tag = 'scoped memory for tpu_custom_call.1']
    #allocation7 [shape = 'u8[131072]{0}', space=vmem, size = 0x20000, scoped, tag = 'input window, operand 9, single buffered']
    #allocation8 [shape = 'u8[65536]{0}', space=vmem, size = 0x10000, scoped, tag = 'input window, operand 11, single buffered']
    #allocation9 [shape = 's32[1]{0}', space=sflag, size = 0x4, scoped, tag = 'scoped memory for tpu_custom_call.1']
    #allocation10 [shape = 'u8[4096]{0}', space=vmem, size = 0x1000, scoped, tag = 'output window, operand 0, single buffered']
    %18 = vsyncpa [#allocation3], 0
    %19 = vsyncpa [#allocation6], 0
    %20 = vsyncpa [#allocation9], 0
    %21 = vsyncpa [#allocation4], 0
    // Predicated region
    $region2: #{tpu_custom_call.1} parent=1 // pred_check
      _
    $region3: #{tpu_custom_call.1} parent=1 // pred_check_branch
      %23 = sbr.rel (0) target = $region5
    $region4: #{tpu_custom_call.1} parent=1 // pred_region
      _
    $region5: #{tpu_custom_call.1} parent=1 // pred_fallthru
      _
    // Predicated region
    $region6: #{tpu_custom_call.1} parent=1 // pred_check
      _
    $region7: #{tpu_custom_call.1} parent=1 // pred_check_branch
      %25 = sbr.rel (0) target = $region9
    $region8: #{tpu_custom_call.1} parent=1 // pred_region
      _
    $region9: #{tpu_custom_call.1} parent=1 // pred_fallthru
      _
    // Predicated region
    $region10: #{tpu_custom_call.1} parent=1 // pred_check
      _
    $region11: #{tpu_custom_call.1} parent=1 // pred_check_branch
      %27 = sbr.rel (0) target = $region13
    $region12: #{tpu_custom_call.1} parent=1 // pred_region
      _
    $region13: #{tpu_custom_call.1} parent=1 // pred_fallthru
      _
    // Predicated region
    $region14: #{tpu_custom_call.1} parent=1 // pred_check
      _
    $region15: #{tpu_custom_call.1} parent=1 // pred_check_branch
      %29 = sbr.rel (0) target = $region17
    $region16: #{tpu_custom_call.1} parent=1 // pred_region
      _
    $region17: #{tpu_custom_call.1} parent=1 // pred_fallthru
      _
    // Predicated region
    $region18: #{tpu_custom_call.1} parent=1 // pred_check
      _
    $region19: #{tpu_custom_call.1} parent=1 // pred_check_branch
      %31 = sbr.rel (0) target = $region21
    $region20: #{tpu_custom_call.1} parent=1 // pred_region
      _
    $region21: #{tpu_custom_call.1} parent=1 // pred_fallthru
      _
    // Predicated region
    $region22: #{tpu_custom_call.1} parent=1 // pred_check
      _
    $region23: #{tpu_custom_call.1} parent=1 // pred_check_branch
      %33 = sbr.rel (0) target = $region25
    $region24: #{tpu_custom_call.1} parent=1 // pred_region
      %s35 = ssub.s32 512, 512
      %36 = vsyncadd [#allocation3], %s35
      %s37 = sshll.u32 [#allocation2], 4
      %s38 = int_to_ptr.vmem [resolvable:$true] %s37
      %43 = dma.hbm_to_vmem [thread:$0]  %s5, 512, %s38, [#allocation3], 64, 64, 4
    $region25: #{tpu_custom_call.1} parent=1 // pred_fallthru
      _
    // Predicated region
    $region26: #{tpu_custom_call.1} parent=1 // pred_check
      _
    $region27: #{tpu_custom_call.1} parent=1 // pred_check_branch
      %45 = sbr.rel (0) target = $region29
    $region28: #{tpu_custom_call.1} parent=1 // pred_region
      _
    $region29: #{tpu_custom_call.1} parent=1 // pred_fallthru
      _
    // Predicated region
    $region30: #{tpu_custom_call.1} parent=1 // pred_check
      _
    $region31: #{tpu_custom_call.1} parent=1 // pred_check_branch
      %47 = sbr.rel (0) target = $region33
    $region32: #{tpu_custom_call.1} parent=1 // pred_region
      %s49 = ssub.s32 2048, 2048
      %50 = vsyncadd [#allocation6], %s49
      %s51 = sshll.u32 [#allocation5], 4
      %s52 = int_to_ptr.vmem [resolvable:$true] %s51
      %57 = dma.hbm_to_vmem [thread:$0]  %s7, 2048, %s52, [#allocation6], 128, 128, 8
    $region33: #{tpu_custom_call.1} parent=1 // pred_fallthru
      _
    // Predicated region
    $region34: #{tpu_custom_call.1} parent=1 // pred_check
      _
    $region35: #{tpu_custom_call.1} parent=1 // pred_check_branch
      %59 = sbr.rel (0) target = $region37
    $region36: #{tpu_custom_call.1} parent=1 // pred_region
      _
    $region37: #{tpu_custom_call.1} parent=1 // pred_fallthru
      _
    // Predicated region
    $region38: #{tpu_custom_call.1} parent=1 // pred_check
      _
    $region39: #{tpu_custom_call.1} parent=1 // pred_check_branch
      %61 = sbr.rel (0) target = $region41
    $region40: #{tpu_custom_call.1} parent=1 // pred_region
      %s63 = ssub.s32 4096, 4096
      %64 = vsyncadd [#allocation6], %s63
      %s65 = sshll.u32 [#allocation7], 4
      %s66 = int_to_ptr.vmem [resolvable:$true] %s65
      %71 = dma.hbm_to_vmem [thread:$0]  %s9, 4096, %s66, [#allocation6], 128, 128, 8
    $region41: #{tpu_custom_call.1} parent=1 // pred_fallthru
      _
    // Predicated region
    $region42: #{tpu_custom_call.1} parent=1 // pred_check
      _
    $region43: #{tpu_custom_call.1} parent=1 // pred_check_branch
      %73 = sbr.rel (0) target = $region45
    $region44: #{tpu_custom_call.1} parent=1 // pred_region
      _
    $region45: #{tpu_custom_call.1} parent=1 // pred_fallthru
      _
    // Predicated region
    $region46: #{tpu_custom_call.1} parent=1 // pred_check
      _
    $region47: #{tpu_custom_call.1} parent=1 // pred_check_branch
      %75 = sbr.rel (0) target = $region49
    $region48: #{tpu_custom_call.1} parent=1 // pred_region
      %s77 = ssub.s32 2048, 2048
      %78 = vsyncadd [#allocation9], %s77
      %s79 = sshll.u32 [#allocation8], 4
      %s80 = int_to_ptr.vmem [resolvable:$true] %s79
      %85 = dma.hbm_to_vmem [thread:$0]  %s11, 2048, %s80, [#allocation9], 64, 64, 4
    $region49: #{tpu_custom_call.1} parent=1 // pred_fallthru
      _
    // Predicated region
    $region50: #{tpu_custom_call.1} parent=1 // pred_check
      _
    $region51: #{tpu_custom_call.1} parent=1 // pred_check_branch
      %87 = sbr.rel (0) target = $region53
    $region52: #{tpu_custom_call.1} parent=1 // pred_region
      _
    $region53: #{tpu_custom_call.1} parent=1 // pred_fallthru
      _
    // Predicated region
    $region54: #{tpu_custom_call.1} parent=1 // pred_check
      _
    $region55: #{tpu_custom_call.1} parent=1 // pred_check_branch
      %89 = sbr.rel (0) target = $region57
    $region56: #{tpu_custom_call.1} parent=1 // pred_region
      %90 = dma.done [#allocation3], 512
    $region57: #{tpu_custom_call.1} parent=1 // pred_fallthru
      _
    // Predicated region
    $region58: #{tpu_custom_call.1} parent=1 // pred_check
      _
    $region59: #{tpu_custom_call.1} parent=1 // pred_check_branch
      %92 = sbr.rel (0) target = $region61
    $region60: #{tpu_custom_call.1} parent=1 // pred_region
      %93 = dma.done [#allocation6], 2048
    $region61: #{tpu_custom_call.1} parent=1 // pred_fallthru
      _
    // Predicated region
    $region62: #{tpu_custom_call.1} parent=1 // pred_check
      _
    $region63: #{tpu_custom_call.1} parent=1 // pred_check_branch
      %95 = sbr.rel (0) target = $region65
    $region64: #{tpu_custom_call.1} parent=1 // pred_region
      %96 = dma.done [#allocation6], 4096
    $region65: #{tpu_custom_call.1} parent=1 // pred_fallthru
      _
    // Predicated region
    $region66: #{tpu_custom_call.1} parent=1 // pred_check
      _
    $region67: #{tpu_custom_call.1} parent=1 // pred_check_branch
      %98 = sbr.rel (0) target = $region69
    $region68: #{tpu_custom_call.1} parent=1 // pred_region
      %99 = dma.done [#allocation9], 2048
    $region69: #{tpu_custom_call.1} parent=1 // pred_fallthru
      _
    %v101 = vld [vmem:[%s0] sm:$0xff]
    %v102 = vpack.c.bf16 %v101, %v101
    %v103 = vld [vmem:[%s1] sm:$0x3]
    %v104 = vld [vmem:[%s2] sm:$0x1]
    %v106 = vlaneseq
    %v107 = vshrl.u32 %v106, 7
    %v108 = vsub.s32 0, %v107
    %v109 = vrot.slane %v104, %v108
    %vm111 = vcmask 31744
    %v113 = vsel %vm111, %v102, 0
    %vm115 = vcmask 1041408
    %v117 = vsel %vm115, %v103, 0
    %119 = vmatprep.subr.bf16.mxu0 0
    %120 = vmatpush1.bf16.msra.mxu0 %v117
    %121 = vmatprep.subr.bf16.mxu0 0
    %122 = vmatpush1.bf16.msra.mxu0 0
    %123 = vmatprep.subr.bf16.mxu0 0
    %124 = vmatpush1.bf16.msra.mxu0 0
    %125 = vmatprep.subr.bf16.mxu0 0
    %126 = vmatpush1.bf16.msra.mxu0 0
    %127 = vmatprep.subr.bf16.mxu0 0
    %128 = vmatpush1.bf16.msra.mxu0 0
    %129 = vmatprep.subr.bf16.mxu0 0
    %130 = vmatpush1.bf16.msra.mxu0 0
    %131 = vmatprep.subr.bf16.mxu0 0
    %132 = vmatpush1.bf16.msra.mxu0 0
    %133 = vmatprep.subr.bf16.mxu0 0
    %134 = vmatpush1.bf16.msra.mxu0 0
    %135 = vmatprep.subr.bf16.mxu0 0
    %136 = vmatpush1.bf16.msra.mxu0 0
    %137 = vmatprep.subr.bf16.mxu0 0
    %138 = vmatpush1.bf16.msra.mxu0 0
    %139 = vmatprep.subr.bf16.mxu0 0
    %140 = vmatpush1.bf16.msra.mxu0 0
    %141 = vmatprep.subr.bf16.mxu0 0
    %142 = vmatpush1.bf16.msra.mxu0 0
    %143 = vmatprep.subr.bf16.mxu0 0
    %144 = vmatpush1.bf16.msra.mxu0 0
    %145 = vmatprep.subr.bf16.mxu0 0
    %146 = vmatpush1.bf16.msra.mxu0 0
    %147 = vmatprep.subr.bf16.mxu0 0
    %148 = vmatpush1.bf16.msra.mxu0 0
    %149 = vmatprep.subr.bf16.mxu0 0
    %150 = vmatpush1.bf16.msra.mxu0 0
    %151 = vmatprep.mubr.bf16.mxu0 0
    %152 = vmatmul.mubr.bf16.gmra.mrb[0].mxu0 %v113
    %v153 = vpop.f32.mrb[0].mxu0
    %v154 = vadd.f32 %v109, %v153
    %v155 = vpop.f32.mrb[0].mxu0
    %v156 = vpop.f32.mrb[0].mxu0
    %v157 = vpop.f32.mrb[0].mxu0
    %158 = vdwg.mxu0
    %vm159 = vcmp.ge.f32.partialorder %v154, 0.0
    %v160 = vmul.f32 %v154, 0.01
    %v161 = vsel %vm159, %v154, %v160
    %v162 = vpack.c.bf16 %v161, %v161
    %v163 = vld [vmem:[%s3] sm:$0xf]
    %v164 = vld [vmem:[%s3 + $0x4] sm:$0xf]
    %v165 = vld [vmem:[%s3 + $0x8] sm:$0xf]
    %v166 = vld [vmem:[%s3 + $0xc] sm:$0xf]
    %v167 = vld [vmem:[%s4] sm:$0x1]
    %v169 = vlaneseq
    %v170 = vshrl.u32 %v169, 7
    %v171 = vsub.s32 0, %v170
    %v172 = vrot.slane %v167, %v171
    %v178 = vunpack.c.l.b16 %v163
    %v179 = vunpack.c.l.b16 %v164
    %v180 = vunpack.c.l.b16 %v165
    %v181 = vunpack.c.l.b16 %v166
    %v182 = vpack.c.b16 %v179, %v178
    %v183 = vpack.c.b16 %v181, %v180
    %vm186 = vcmask 261120
    %v188 = vsel %vm186, %v162, 0
    %190 = vmatprep.subr.bf16.mxu0 0
    %191 = vmatpush1.bf16.msra.mxu0 %v182
    %192 = vmatprep.subr.bf16.mxu0 0
    %193 = vmatpush1.bf16.msra.mxu0 %v183
    %194 = vmatprep.subr.bf16.mxu0 0
    %195 = vmatpush1.bf16.msra.mxu0 0
    %196 = vmatprep.subr.bf16.mxu0 0
    %197 = vmatpush1.bf16.msra.mxu0 0
    %198 = vmatprep.subr.bf16.mxu0 0
    %199 = vmatpush1.bf16.msra.mxu0 0
    %200 = vmatprep.subr.bf16.mxu0 0
    %201 = vmatpush1.bf16.msra.mxu0 0
    %202 = vmatprep.subr.bf16.mxu0 0
    %203 = vmatpush1.bf16.msra.mxu0 0
    %204 = vmatprep.subr.bf16.mxu0 0
    %205 = vmatpush1.bf16.msra.mxu0 0
    %206 = vmatprep.subr.bf16.mxu0 0
    %207 = vmatpush1.bf16.msra.mxu0 0
    %208 = vmatprep.subr.bf16.mxu0 0
    %209 = vmatpush1.bf16.msra.mxu0 0
    %210 = vmatprep.subr.bf16.mxu0 0
    %211 = vmatpush1.bf16.msra.mxu0 0
    %212 = vmatprep.subr.bf16.mxu0 0
    %213 = vmatpush1.bf16.msra.mxu0 0
    %214 = vmatprep.subr.bf16.mxu0 0
    %215 = vmatpush1.bf16.msra.mxu0 0
    %216 = vmatprep.subr.bf16.mxu0 0
    %217 = vmatpush1.bf16.msra.mxu0 0
    %218 = vmatprep.subr.bf16.mxu0 0
    %219 = vmatpush1.bf16.msra.mxu0 0
    %220 = vmatprep.subr.bf16.mxu0 0
    %221 = vmatpush1.bf16.msra.mxu0 0
    %222 = vmatprep.mubr.bf16.mxu0 0
    %223 = vmatmul.mubr.bf16.gmra.mrb[0].mxu0 %v188
    %v224 = vpop.f32.mrb[0].mxu0
    %v225 = vadd.f32 %v172, %v224
    %v226 = vpop.f32.mrb[0].mxu0
    %v227 = vpop.f32.mrb[0].mxu0
    %v228 = vpop.f32.mrb[0].mxu0
    %229 = vdwg.mxu0
    %vm230 = vcmp.ge.f32.partialorder %v225, 0.0
    %v231 = vmul.f32 %v225, 0.01
    %v232 = vsel %vm230, %v225, %v231
    %v233 = vpack.c.bf16 %v232, %v232
    %v234 = vld [vmem:[#allocation2] sm:$0xf]
    %v235 = vld [vmem:[#allocation2 + $0x4] sm:$0xf]
    %v236 = vld [vmem:[#allocation2 + $0x8] sm:$0xf]
    %v237 = vld [vmem:[#allocation2 + $0xc] sm:$0xf]
    %v238 = vld [vmem:[#allocation2 + $0x10] sm:$0xf]
    %v239 = vld [vmem:[#allocation2 + $0x14] sm:$0xf]
    %v240 = vld [vmem:[#allocation2 + $0x18] sm:$0xf]
    %v241 = vld [vmem:[#allocation2 + $0x1c] sm:$0xf]
    %v242 = vld [vmem:[%s6] sm:$0x1]
    %v244 = vlaneseq
    %v245 = vshrl.u32 %v244, 7
    %v246 = vsub.s32 0, %v245
    %v247 = vrot.slane %v242, %v246
    %v257 = vunpack.c.l.b16 %v234
    %v258 = vunpack.c.l.b16 %v235
    %v259 = vunpack.c.l.b16 %v236
    %v260 = vunpack.c.l.b16 %v237
    %v261 = vunpack.c.l.b16 %v238
    %v262 = vunpack.c.l.b16 %v239
    %v263 = vunpack.c.l.b16 %v240
    %v264 = vunpack.c.l.b16 %v241
    %v265 = vpack.c.b16 %v258, %v257
    %v266 = vpack.c.b16 %v260, %v259
    %v267 = vpack.c.b16 %v262, %v261
    %v268 = vpack.c.b16 %v264, %v263
    %vm273 = vcmask 523264
    %v275 = vsel %vm273, %v233, 0
    %277 = vmatprep.subr.bf16.mxu0 0
    %278 = vmatpush1.bf16.msra.mxu0 %v265
    %279 = vmatprep.subr.bf16.mxu0 0
    %280 = vmatpush1.bf16.msra.mxu0 %v266
    %281 = vmatprep.subr.bf16.mxu0 0
    %282 = vmatpush1.bf16.msra.mxu0 %v267
    %283 = vmatprep.subr.bf16.mxu0 0
    %284 = vmatpush1.bf16.msra.mxu0 %v268
    %285 = vmatprep.subr.bf16.mxu0 0
    %286 = vmatpush1.bf16.msra.mxu0 0
    %287 = vmatprep.subr.bf16.mxu0 0
    %288 = vmatpush1.bf16.msra.mxu0 0
    %289 = vmatprep.subr.bf16.mxu0 0
    %290 = vmatpush1.bf16.msra.mxu0 0
    %291 = vmatprep.subr.bf16.mxu0 0
    %292 = vmatpush1.bf16.msra.mxu0 0
    %293 = vmatprep.subr.bf16.mxu0 0
    %294 = vmatpush1.bf16.msra.mxu0 0
    %295 = vmatprep.subr.bf16.mxu0 0
    %296 = vmatpush1.bf16.msra.mxu0 0
    %297 = vmatprep.subr.bf16.mxu0 0
    %298 = vmatpush1.bf16.msra.mxu0 0
    %299 = vmatprep.subr.bf16.mxu0 0
    %300 = vmatpush1.bf16.msra.mxu0 0
    %301 = vmatprep.subr.bf16.mxu0 0
    %302 = vmatpush1.bf16.msra.mxu0 0
    %303 = vmatprep.subr.bf16.mxu0 0
    %304 = vmatpush1.bf16.msra.mxu0 0
    %305 = vmatprep.subr.bf16.mxu0 0
    %306 = vmatpush1.bf16.msra.mxu0 0
    %307 = vmatprep.subr.bf16.mxu0 0
    %308 = vmatpush1.bf16.msra.mxu0 0
    %309 = vmatprep.mubr.bf16.mxu0 0
    %310 = vmatmul.mubr.bf16.gmra.mrb[0].mxu0 %v275
    %v311 = vpop.f32.mrb[0].mxu0
    %v312 = vadd.f32 %v247, %v311
    %v313 = vpop.f32.mrb[0].mxu0
    %v314 = vpop.f32.mrb[0].mxu0
    %v315 = vpop.f32.mrb[0].mxu0
    %316 = vdwg.mxu0
    %vm317 = vcmp.ge.f32.partialorder %v312, 0.0
    %v318 = vmul.f32 %v312, 0.01
    %v319 = vsel %vm317, %v312, %v318
    %v320 = vpack.c.bf16 %v319, %v319
    %v321 = vld [vmem:[#allocation5] sm:$0xff]
    %v322 = vld [vmem:[#allocation5 + $0x8] sm:$0xff]
    %v323 = vld [vmem:[#allocation5 + $0x10] sm:$0xff]
    %v324 = vld [vmem:[#allocation5 + $0x18] sm:$0xff]
    %v325 = vld [vmem:[#allocation5 + $0x20] sm:$0xff]
    %v326 = vld [vmem:[#allocation5 + $0x28] sm:$0xff]
    %v327 = vld [vmem:[#allocation5 + $0x30] sm:$0xff]
    %v328 = vld [vmem:[#allocation5 + $0x38] sm:$0xff]
    %v329 = vld [vmem:[#allocation5 + $0x40] sm:$0xff]
    %v330 = vld [vmem:[#allocation5 + $0x48] sm:$0xff]
    %v331 = vld [vmem:[#allocation5 + $0x50] sm:$0xff]
    %v332 = vld [vmem:[#allocation5 + $0x58] sm:$0xff]
    %v333 = vld [vmem:[#allocation5 + $0x60] sm:$0xff]
    %v334 = vld [vmem:[#allocation5 + $0x68] sm:$0xff]
    %v335 = vld [vmem:[#allocation5 + $0x70] sm:$0xff]
    %v336 = vld [vmem:[#allocation5 + $0x78] sm:$0xff]
    %v337 = vld [vmem:[%s8] sm:$0x3]
    %v339 = vlaneseq
    %v340 = vshrl.u32 %v339, 7
    %v341 = vsub.s32 0, %v340
    %v342 = vrot.slane %v337, %v341
    %v343 = vlaneseq
    %v344 = vshrl.u32 %v343, 7
    %v345 = vsub.s32 1, %v344
    %v346 = vrot.slane %v337, %v345
    %v365 = vunpack.c.l.b16 %v321
    %v366 = vunpack.c.h.b16 %v321
    %v367 = vunpack.c.l.b16 %v322
    %v368 = vunpack.c.h.b16 %v322
    %v369 = vunpack.c.l.b16 %v323
    %v370 = vunpack.c.h.b16 %v323
    %v371 = vunpack.c.l.b16 %v324
    %v372 = vunpack.c.h.b16 %v324
    %v373 = vunpack.c.l.b16 %v325
    %v374 = vunpack.c.h.b16 %v325
    %v375 = vunpack.c.l.b16 %v326
    %v376 = vunpack.c.h.b16 %v326
    %v377 = vunpack.c.l.b16 %v327
    %v378 = vunpack.c.h.b16 %v327
    %v379 = vunpack.c.l.b16 %v328
    %v380 = vunpack.c.h.b16 %v328
    %v381 = vunpack.c.l.b16 %v329
    %v382 = vunpack.c.h.b16 %v329
    %v383 = vunpack.c.l.b16 %v330
    %v384 = vunpack.c.h.b16 %v330
    %v385 = vunpack.c.l.b16 %v331
    %v386 = vunpack.c.h.b16 %v331
    %v387 = vunpack.c.l.b16 %v332
    %v388 = vunpack.c.h.b16 %v332
    %v389 = vunpack.c.l.b16 %v333
    %v390 = vunpack.c.h.b16 %v333
    %v391 = vunpack.c.l.b16 %v334
    %v392 = vunpack.c.h.b16 %v334
    %v393 = vunpack.c.l.b16 %v335
    %v394 = vunpack.c.h.b16 %v335
    %v395 = vunpack.c.l.b16 %v336
    %v396 = vunpack.c.h.b16 %v336
    %v397 = vpack.c.b16 %v367, %v365
    %v398 = vpack.c.b16 %v368, %v366
    %v399 = vpack.c.b16 %v371, %v369
    %v400 = vpack.c.b16 %v372, %v370
    %v401 = vpack.c.b16 %v375, %v373
    %v402 = vpack.c.b16 %v376, %v374
    %v403 = vpack.c.b16 %v379, %v377
    %v404 = vpack.c.b16 %v380, %v378
    %v405 = vpack.c.b16 %v383, %v381
    %v406 = vpack.c.b16 %v384, %v382
    %v407 = vpack.c.b16 %v387, %v385
    %v408 = vpack.c.b16 %v388, %v386
    %v409 = vpack.c.b16 %v391, %v389
    %v410 = vpack.c.b16 %v392, %v390
    %v411 = vpack.c.b16 %v395, %v393
    %v412 = vpack.c.b16 %v396, %v394
    %429 = vmatprep.subr.bf16.mxu0 %v398
    %430 = vmatpush1.bf16.msra.mxu0 %v397
    %431 = vmatprep.subr.bf16.mxu0 %v400
    %432 = vmatpush1.bf16.msra.mxu0 %v399
    %433 = vmatprep.subr.bf16.mxu0 %v402
    %434 = vmatpush1.bf16.msra.mxu0 %v401
    %435 = vmatprep.subr.bf16.mxu0 %v404
    %436 = vmatpush1.bf16.msra.mxu0 %v403
    %437 = vmatprep.subr.bf16.mxu0 %v406
    %438 = vmatpush1.bf16.msra.mxu0 %v405
    %439 = vmatprep.subr.bf16.mxu0 %v408
    %440 = vmatpush1.bf16.msra.mxu0 %v407
    %441 = vmatprep.subr.bf16.mxu0 %v410
    %442 = vmatpush1.bf16.msra.mxu0 %v409
    %443 = vmatprep.subr.bf16.mxu0 %v412
    %444 = vmatpush1.bf16.msra.mxu0 %v411
    %445 = vmatprep.subr.bf16.mxu0 0
    %446 = vmatpush1.bf16.msra.mxu0 0
    %447 = vmatprep.subr.bf16.mxu0 0
    %448 = vmatpush1.bf16.msra.mxu0 0
    %449 = vmatprep.subr.bf16.mxu0 0
    %450 = vmatpush1.bf16.msra.mxu0 0
    %451 = vmatprep.subr.bf16.mxu0 0
    %452 = vmatpush1.bf16.msra.mxu0 0
    %453 = vmatprep.subr.bf16.mxu0 0
    %454 = vmatpush1.bf16.msra.mxu0 0
    %455 = vmatprep.subr.bf16.mxu0 0
    %456 = vmatpush1.bf16.msra.mxu0 0
    %457 = vmatprep.subr.bf16.mxu0 0
    %458 = vmatpush1.bf16.msra.mxu0 0
    %459 = vmatprep.subr.bf16.mxu0 0
    %460 = vmatpush1.bf16.msra.mxu0 0
    %461 = vmatprep.mubr.bf16.mxu0 0
    %462 = vmatmul.mubr.bf16.gmra.mrb[0].mxu0 %v320
    %v463 = vpop.f32.mrb[0].mxu0
    %v464 = vadd.f32 %v342, %v463
    %v465 = vpop.f32.mrb[0].mxu0
    %v466 = vadd.f32 %v346, %v465
    %v467 = vpop.f32.mrb[0].mxu0
    %v468 = vpop.f32.mrb[0].mxu0
    %469 = vdwg.mxu0
    %vm470 = vcmp.ge.f32.partialorder %v464, 0.0
    %vm471 = vcmp.ge.f32.partialorder %v466, 0.0
    %v472 = vmul.f32 %v464, 0.01
    %v473 = vmul.f32 %v466, 0.01
    %v474 = vsel %vm470, %v464, %v472
    %v475 = vsel %vm471, %v466, %v473
    %v476 = vpack.c.bf16 %v474, %v474
    %v477 = vpack.c.bf16 %v475, %v475
    %v478 = vld [vmem:[#allocation7] sm:$0xff]
    %v479 = vld [vmem:[#allocation7 + $0x8] sm:$0xff]
    %v480 = vld [vmem:[#allocation7 + $0x10] sm:$0xff]
    %v481 = vld [vmem:[#allocation7 + $0x18] sm:$0xff]
    %v482 = vld [vmem:[#allocation7 + $0x20] sm:$0xff]
    %v483 = vld [vmem:[#allocation7 + $0x28] sm:$0xff]
    %v484 = vld [vmem:[#allocation7 + $0x30] sm:$0xff]
    %v485 = vld [vmem:[#allocation7 + $0x38] sm:$0xff]
    %v486 = vld [vmem:[#allocation7 + $0x40] sm:$0xff]
    %v487 = vld [vmem:[#allocation7 + $0x48] sm:$0xff]
    %v488 = vld [vmem:[#allocation7 + $0x50] sm:$0xff]
    %v489 = vld [vmem:[#allocation7 + $0x58] sm:$0xff]
    %v490 = vld [vmem:[#allocation7 + $0x60] sm:$0xff]
    %v491 = vld [vmem:[#allocation7 + $0x68] sm:$0xff]
    %v492 = vld [vmem:[#allocation7 + $0x70] sm:$0xff]
    %v493 = vld [vmem:[#allocation7 + $0x78] sm:$0xff]
    %v494 = vld [vmem:[#allocation7 + $0x80] sm:$0xff]
    %v495 = vld [vmem:[#allocation7 + $0x88] sm:$0xff]
    %v496 = vld [vmem:[#allocation7 + $0x90] sm:$0xff]
    %v497 = vld [vmem:[#allocation7 + $0x98] sm:$0xff]
    %v498 = vld [vmem:[#allocation7 + $0xa0] sm:$0xff]
    %v499 = vld [vmem:[#allocation7 + $0xa8] sm:$0xff]
    %v500 = vld [vmem:[#allocation7 + $0xb0] sm:$0xff]
    %v501 = vld [vmem:[#allocation7 + $0xb8] sm:$0xff]
    %v502 = vld [vmem:[#allocation7 + $0xc0] sm:$0xff]
    %v503 = vld [vmem:[#allocation7 + $0xc8] sm:$0xff]
    %v504 = vld [vmem:[#allocation7 + $0xd0] sm:$0xff]
    %v505 = vld [vmem:[#allocation7 + $0xd8] sm:$0xff]
    %v506 = vld [vmem:[#allocation7 + $0xe0] sm:$0xff]
    %v507 = vld [vmem:[#allocation7 + $0xe8] sm:$0xff]
    %v508 = vld [vmem:[#allocation7 + $0xf0] sm:$0xff]
    %v509 = vld [vmem:[#allocation7 + $0xf8] sm:$0xff]
    %v510 = vld [vmem:[%s10] sm:$0x3]
    %v512 = vlaneseq
    %v513 = vshrl.u32 %v512, 7
    %v514 = vsub.s32 0, %v513
    %v515 = vrot.slane %v510, %v514
    %v516 = vlaneseq
    %v517 = vshrl.u32 %v516, 7
    %v518 = vsub.s32 1, %v517
    %v519 = vrot.slane %v510, %v518
    %v554 = vunpack.c.l.b16 %v478
    %v555 = vunpack.c.h.b16 %v478
    %v556 = vunpack.c.l.b16 %v479
    %v557 = vunpack.c.h.b16 %v479
    %v558 = vunpack.c.l.b16 %v480
    %v559 = vunpack.c.h.b16 %v480
    %v560 = vunpack.c.l.b16 %v481
    %v561 = vunpack.c.h.b16 %v481
    %v562 = vunpack.c.l.b16 %v482
    %v563 = vunpack.c.h.b16 %v482
    %v564 = vunpack.c.l.b16 %v483
    %v565 = vunpack.c.h.b16 %v483
    %v566 = vunpack.c.l.b16 %v484
    %v567 = vunpack.c.h.b16 %v484
    %v568 = vunpack.c.l.b16 %v485
    %v569 = vunpack.c.h.b16 %v485
    %v570 = vunpack.c.l.b16 %v486
    %v571 = vunpack.c.h.b16 %v486
    %v572 = vunpack.c.l.b16 %v487
    %v573 = vunpack.c.h.b16 %v487
    %v574 = vunpack.c.l.b16 %v488
    %v575 = vunpack.c.h.b16 %v488
    %v576 = vunpack.c.l.b16 %v489
    %v577 = vunpack.c.h.b16 %v489
    %v578 = vunpack.c.l.b16 %v490
    %v579 = vunpack.c.h.b16 %v490
    %v580 = vunpack.c.l.b16 %v491
    %v581 = vunpack.c.h.b16 %v491
    %v582 = vunpack.c.l.b16 %v492
    %v583 = vunpack.c.h.b16 %v492
    %v584 = vunpack.c.l.b16 %v493
    %v585 = vunpack.c.h.b16 %v493
    %v586 = vunpack.c.l.b16 %v494
    %v587 = vunpack.c.h.b16 %v494
    %v588 = vunpack.c.l.b16 %v495
    %v589 = vunpack.c.h.b16 %v495
    %v590 = vunpack.c.l.b16 %v496
    %v591 = vunpack.c.h.b16 %v496
    %v592 = vunpack.c.l.b16 %v497
    %v593 = vunpack.c.h.b16 %v497
    %v594 = vunpack.c.l.b16 %v498
    %v595 = vunpack.c.h.b16 %v498
    %v596 = vunpack.c.l.b16 %v499
    %v597 = vunpack.c.h.b16 %v499
    %v598 = vunpack.c.l.b16 %v500
    %v599 = vunpack.c.h.b16 %v500
    %v600 = vunpack.c.l.b16 %v501
    %v601 = vunpack.c.h.b16 %v501
    %v602 = vunpack.c.l.b16 %v502
    %v603 = vunpack.c.h.b16 %v502
    %v604 = vunpack.c.l.b16 %v503
    %v605 = vunpack.c.h.b16 %v503
    %v606 = vunpack.c.l.b16 %v504
    %v607 = vunpack.c.h.b16 %v504
    %v608 = vunpack.c.l.b16 %v505
    %v609 = vunpack.c.h.b16 %v505
    %v610 = vunpack.c.l.b16 %v506
    %v611 = vunpack.c.h.b16 %v506
    %v612 = vunpack.c.l.b16 %v507
    %v613 = vunpack.c.h.b16 %v507
    %v614 = vunpack.c.l.b16 %v508
    %v615 = vunpack.c.h.b16 %v508
    %v616 = vunpack.c.l.b16 %v509
    %v617 = vunpack.c.h.b16 %v509
    %v618 = vpack.c.b16 %v556, %v554
    %v619 = vpack.c.b16 %v557, %v555
    %v620 = vpack.c.b16 %v560, %v558
    %v621 = vpack.c.b16 %v561, %v559
    %v622 = vpack.c.b16 %v564, %v562
    %v623 = vpack.c.b16 %v565, %v563
    %v624 = vpack.c.b16 %v568, %v566
    %v625 = vpack.c.b16 %v569, %v567
    %v626 = vpack.c.b16 %v572, %v570
    %v627 = vpack.c.b16 %v573, %v571
    %v628 = vpack.c.b16 %v576, %v574
    %v629 = vpack.c.b16 %v577, %v575
    %v630 = vpack.c.b16 %v580, %v578
    %v631 = vpack.c.b16 %v581, %v579
    %v632 = vpack.c.b16 %v584, %v582
    %v633 = vpack.c.b16 %v585, %v583
    %v634 = vpack.c.b16 %v588, %v586
    %v635 = vpack.c.b16 %v589, %v587
    %v636 = vpack.c.b16 %v592, %v590
    %v637 = vpack.c.b16 %v593, %v591
    %v638 = vpack.c.b16 %v596, %v594
    %v639 = vpack.c.b16 %v597, %v595
    %v640 = vpack.c.b16 %v600, %v598
    %v641 = vpack.c.b16 %v601, %v599
    %v642 = vpack.c.b16 %v604, %v602
    %v643 = vpack.c.b16 %v605, %v603
    %v644 = vpack.c.b16 %v608, %v606
    %v645 = vpack.c.b16 %v609, %v607
    %v646 = vpack.c.b16 %v612, %v610
    %v647 = vpack.c.b16 %v613, %v611
    %v648 = vpack.c.b16 %v616, %v614
    %v649 = vpack.c.b16 %v617, %v615
    %682 = vmatprep.subr.bf16.mxu0 %v619
    %683 = vmatpush1.bf16.msra.mxu0 %v618
    %684 = vmatprep.subr.bf16.mxu0 %v621
    %685 = vmatpush1.bf16.msra.mxu0 %v620
    %686 = vmatprep.subr.bf16.mxu0 %v623
    %687 = vmatpush1.bf16.msra.mxu0 %v622
    %688 = vmatprep.subr.bf16.mxu0 %v625
    %689 = vmatpush1.bf16.msra.mxu0 %v624
    %690 = vmatprep.subr.bf16.mxu0 %v627
    %691 = vmatpush1.bf16.msra.mxu0 %v626
    %692 = vmatprep.subr.bf16.mxu0 %v629
    %693 = vmatpush1.bf16.msra.mxu0 %v628
    %694 = vmatprep.subr.bf16.mxu0 %v631
    %695 = vmatpush1.bf16.msra.mxu0 %v630
    %696 = vmatprep.subr.bf16.mxu0 %v633
    %697 = vmatpush1.bf16.msra.mxu0 %v632
    %698 = vmatprep.subr.bf16.mxu0 %v635
    %699 = vmatpush1.bf16.msra.mxu0 %v634
    %700 = vmatprep.subr.bf16.mxu0 %v637
    %701 = vmatpush1.bf16.msra.mxu0 %v636
    %702 = vmatprep.subr.bf16.mxu0 %v639
    %703 = vmatpush1.bf16.msra.mxu0 %v638
    %704 = vmatprep.subr.bf16.mxu0 %v641
    %705 = vmatpush1.bf16.msra.mxu0 %v640
    %706 = vmatprep.subr.bf16.mxu0 %v643
    %707 = vmatpush1.bf16.msra.mxu0 %v642
    %708 = vmatprep.subr.bf16.mxu0 %v645
    %709 = vmatpush1.bf16.msra.mxu0 %v644
    %710 = vmatprep.subr.bf16.mxu0 %v647
    %711 = vmatpush1.bf16.msra.mxu0 %v646
    %712 = vmatprep.subr.bf16.mxu0 %v649
    %713 = vmatpush1.bf16.msra.mxu0 %v648
    %714 = vmatprep.mubr.bf16.mxu0 %v477
    %715 = vmatmul.mubr.bf16.gmra.mrb[0].mxu0 %v476
    %v716 = vpop.f32.mrb[0].mxu0
    %v717 = vadd.f32 %v515, %v716
    %v718 = vpop.f32.mrb[0].mxu0
    %v719 = vadd.f32 %v519, %v718
    %v720 = vpop.f32.mrb[0].mxu0
    %v721 = vpop.f32.mrb[0].mxu0
    %722 = vdwg.mxu0
    %v723 = vmax.f32 %v717, 0.0
    %v724 = vmax.f32 %v719, 0.0
    %v725 = vpack.c.bf16 %v723, %v723
    %v726 = vpack.c.bf16 %v724, %v724
    %v727 = vld [vmem:[#allocation8] sm:$0xf]
    %v728 = vld [vmem:[#allocation8 + $0x4] sm:$0xf]
    %v729 = vld [vmem:[#allocation8 + $0x8] sm:$0xf]
    %v730 = vld [vmem:[#allocation8 + $0xc] sm:$0xf]
    %v731 = vld [vmem:[#allocation8 + $0x10] sm:$0xf]
    %v732 = vld [vmem:[#allocation8 + $0x14] sm:$0xf]
    %v733 = vld [vmem:[#allocation8 + $0x18] sm:$0xf]
    %v734 = vld [vmem:[#allocation8 + $0x1c] sm:$0xf]
    %v735 = vld [vmem:[#allocation8 + $0x20] sm:$0xf]
    %v736 = vld [vmem:[#allocation8 + $0x24] sm:$0xf]
    %v737 = vld [vmem:[#allocation8 + $0x28] sm:$0xf]
    %v738 = vld [vmem:[#allocation8 + $0x2c] sm:$0xf]
    %v739 = vld [vmem:[#allocation8 + $0x30] sm:$0xf]
    %v740 = vld [vmem:[#allocation8 + $0x34] sm:$0xf]
    %v741 = vld [vmem:[#allocation8 + $0x38] sm:$0xf]
    %v742 = vld [vmem:[#allocation8 + $0x3c] sm:$0xf]
    %v743 = vld [vmem:[#allocation8 + $0x40] sm:$0xf]
    %v744 = vld [vmem:[#allocation8 + $0x44] sm:$0xf]
    %v745 = vld [vmem:[#allocation8 + $0x48] sm:$0xf]
    %v746 = vld [vmem:[#allocation8 + $0x4c] sm:$0xf]
    %v747 = vld [vmem:[#allocation8 + $0x50] sm:$0xf]
    %v748 = vld [vmem:[#allocation8 + $0x54] sm:$0xf]
    %v749 = vld [vmem:[#allocation8 + $0x58] sm:$0xf]
    %v750 = vld [vmem:[#allocation8 + $0x5c] sm:$0xf]
    %v751 = vld [vmem:[#allocation8 + $0x60] sm:$0xf]
    %v752 = vld [vmem:[#allocation8 + $0x64] sm:$0xf]
    %v753 = vld [vmem:[#allocation8 + $0x68] sm:$0xf]
    %v754 = vld [vmem:[#allocation8 + $0x6c] sm:$0xf]
    %v755 = vld [vmem:[#allocation8 + $0x70] sm:$0xf]
    %v756 = vld [vmem:[#allocation8 + $0x74] sm:$0xf]
    %v757 = vld [vmem:[#allocation8 + $0x78] sm:$0xf]
    %v758 = vld [vmem:[#allocation8 + $0x7c] sm:$0xf]
    %v759 = vld [vmem:[%s12] sm:$0x1]
    %v761 = vlaneseq
    %v762 = vshrl.u32 %v761, 7
    %v763 = vsub.s32 0, %v762
    %v764 = vrot.slane %v759, %v763
    %v798 = vunpack.c.l.b16 %v727
    %v799 = vunpack.c.l.b16 %v728
    %v800 = vunpack.c.l.b16 %v729
    %v801 = vunpack.c.l.b16 %v730
    %v802 = vunpack.c.l.b16 %v731
    %v803 = vunpack.c.l.b16 %v732
    %v804 = vunpack.c.l.b16 %v733
    %v805 = vunpack.c.l.b16 %v734
    %v806 = vunpack.c.l.b16 %v735
    %v807 = vunpack.c.l.b16 %v736
    %v808 = vunpack.c.l.b16 %v737
    %v809 = vunpack.c.l.b16 %v738
    %v810 = vunpack.c.l.b16 %v739
    %v811 = vunpack.c.l.b16 %v740
    %v812 = vunpack.c.l.b16 %v741
    %v813 = vunpack.c.l.b16 %v742
    %v814 = vunpack.c.l.b16 %v743
    %v815 = vunpack.c.l.b16 %v744
    %v816 = vunpack.c.l.b16 %v745
    %v817 = vunpack.c.l.b16 %v746
    %v818 = vunpack.c.l.b16 %v747
    %v819 = vunpack.c.l.b16 %v748
    %v820 = vunpack.c.l.b16 %v749
    %v821 = vunpack.c.l.b16 %v750
    %v822 = vunpack.c.l.b16 %v751
    %v823 = vunpack.c.l.b16 %v752
    %v824 = vunpack.c.l.b16 %v753
    %v825 = vunpack.c.l.b16 %v754
    %v826 = vunpack.c.l.b16 %v755
    %v827 = vunpack.c.l.b16 %v756
    %v828 = vunpack.c.l.b16 %v757
    %v829 = vunpack.c.l.b16 %v758
    %v830 = vpack.c.b16 %v799, %v798
    %v831 = vpack.c.b16 %v801, %v800
    %v832 = vpack.c.b16 %v803, %v802
    %v833 = vpack.c.b16 %v805, %v804
    %v834 = vpack.c.b16 %v807, %v806
    %v835 = vpack.c.b16 %v809, %v808
    %v836 = vpack.c.b16 %v811, %v810
    %v837 = vpack.c.b16 %v813, %v812
    %v838 = vpack.c.b16 %v815, %v814
    %v839 = vpack.c.b16 %v817, %v816
    %v840 = vpack.c.b16 %v819, %v818
    %v841 = vpack.c.b16 %v821, %v820
    %v842 = vpack.c.b16 %v823, %v822
    %v843 = vpack.c.b16 %v825, %v824
    %v844 = vpack.c.b16 %v827, %v826
    %v845 = vpack.c.b16 %v829, %v828
    %862 = vmatprep.subr.bf16.mxu0 0
    %863 = vmatpush1.bf16.msra.mxu0 %v830
    %864 = vmatprep.subr.bf16.mxu0 0
    %865 = vmatpush1.bf16.msra.mxu0 %v831
    %866 = vmatprep.subr.bf16.mxu0 0
    %867 = vmatpush1.bf16.msra.mxu0 %v832
    %868 = vmatprep.subr.bf16.mxu0 0
    %869 = vmatpush1.bf16.msra.mxu0 %v833
    %870 = vmatprep.subr.bf16.mxu0 0
    %871 = vmatpush1.bf16.msra.mxu0 %v834
    %872 = vmatprep.subr.bf16.mxu0 0
    %873 = vmatpush1.bf16.msra.mxu0 %v835
    %874 = vmatprep.subr.bf16.mxu0 0
    %875 = vmatpush1.bf16.msra.mxu0 %v836
    %876 = vmatprep.subr.bf16.mxu0 0
    %877 = vmatpush1.bf16.msra.mxu0 %v837
    %878 = vmatprep.subr.bf16.mxu0 0
    %879 = vmatpush1.bf16.msra.mxu0 %v838
    %880 = vmatprep.subr.bf16.mxu0 0
    %881 = vmatpush1.bf16.msra.mxu0 %v839
    %882 = vmatprep.subr.bf16.mxu0 0
    %883 = vmatpush1.bf16.msra.mxu0 %v840
    %884 = vmatprep.subr.bf16.mxu0 0
    %885 = vmatpush1.bf16.msra.mxu0 %v841
    %886 = vmatprep.subr.bf16.mxu0 0
    %887 = vmatpush1.bf16.msra.mxu0 %v842
    %888 = vmatprep.subr.bf16.mxu0 0
    %889 = vmatpush1.bf16.msra.mxu0 %v843
    %890 = vmatprep.subr.bf16.mxu0 0
    %891 = vmatpush1.bf16.msra.mxu0 %v844
    %892 = vmatprep.subr.bf16.mxu0 0
    %893 = vmatpush1.bf16.msra.mxu0 %v845
    %894 = vmatprep.mubr.bf16.mxu0 %v726
    %895 = vmatmul.mubr.bf16.gmra.mrb[0].mxu0 %v725
    %v896 = vpop.f32.mrb[0].mxu0
    %v897 = vadd.f32 %v764, %v896
    %v898 = vpop.f32.mrb[0].mxu0
    %v899 = vpop.f32.mrb[0].mxu0
    %v900 = vpop.f32.mrb[0].mxu0
    %901 = vdwg.mxu0
    %902 = vst [vmem:[#allocation10] sm:$0xff] %v897
    // Predicated region
    $region70: #{tpu_custom_call.1} parent=1 // pred_check
      _
    $region71: #{tpu_custom_call.1} parent=1 // pred_check_branch
      %904 = sbr.rel (0) target = $region73
    $region72: #{tpu_custom_call.1} parent=1 // pred_region
      %s906 = ssub.s32 128, 128
      %907 = vsyncadd [#allocation4], %s906
      %s909 = sshll.u32 [#allocation10], 4
      %s910 = int_to_ptr.vmem [resolvable:$true] %s909
      %912 = dma.vmem_to_hbm [thread:$0]  %s910, 128, %s13, [#allocation4]
    $region73: #{tpu_custom_call.1} parent=1 // pred_fallthru
      _
    // Predicated region
    $region74: #{tpu_custom_call.1} parent=1 // pred_check
      _
    $region75: #{tpu_custom_call.1} parent=1 // pred_check_branch
      %914 = sbr.rel (0) target = $region77
    $region76: #{tpu_custom_call.1} parent=1 // pred_region
      %915 = dma.done [#allocation4], 128
    $region77: #{tpu_custom_call.1} parent=1 // pred_fallthru
      _
    %916 = vsyncpa [#allocation3], 1
    %917 = vsyncpa [#allocation6], 1
    %918 = vsyncpa [#allocation9], 1
    %919 = vsyncpa [#allocation4], 1

</llo_original>
